<compile_context>
chip_gen: v5e
topology: v5e:2x2
jax: 0.10.0
libtpu: 0.0.40
codegen_flags: <defaults>
</compile_context>

<pallas_src>
import functools

import jax
import jax.numpy as jnp
import numpy as np
from jax.experimental import pallas as pl
from jax.experimental.pallas import tpu as pltpu


# --------------------------------------------------------------------------- kernels
def _noisy_kernel(x_ref, wt_ref, n_ref, o_ref, *, inv_sqrt_m):
    """General path: h = x @ wt + noise ; out_row = sum(h*h, axis=1) / sqrt(M)."""
    h = jnp.dot(x_ref[...], wt_ref[...], preferred_element_type=jnp.float32)
    h = h + n_ref[...]
    row = jnp.sum(h * h, axis=1) * inv_sqrt_m          # (TN,)
    o_ref[...] = row.reshape(o_ref.shape)               # lane-dense (1, 1, TN) store


def _gram_kernel(x_ref, g_ref, o_ref, *, inv_sqrt_m):
    """sigma == 0 path: out_row = (x_n^T G x_n) / sqrt(M),  G = W_s^T W_s (D x D)."""
    x = x_ref[...]
    xg = jnp.dot(x, g_ref[...], preferred_element_type=jnp.float32)
    row = jnp.sum(xg * x.astype(jnp.float32), axis=1) * inv_sqrt_m
    o_ref[...] = row.reshape(o_ref.shape)


# --------------------------------------------------------------------------- setup
def prepare_params(w, dtype=jnp.float32):
    """One-time parameter setup.

    w: (M, D) fc1.weight.
    Returns:
      wt   : (D, M) = fc1.weight^T / sqrt(D)   (MXU-native contraction layout)
      gram : (D, D) = W_s^T @ W_s              (exact sigma==0 rewrite), always f32
    """
    M, D = w.shape
    w_scaled = jnp.asarray(w, jnp.float32) / np.sqrt(D)          # (M, D)
    wt = jnp.asarray(w_scaled.T, dtype=dtype)                    # (D, M)
    gram = jnp.asarray(w_scaled.T @ w_scaled, jnp.float32)       # (D, D)
    return {"wt": wt, "gram": gram, "M": int(M), "D": int(D)}


def sample_noise(key, n, m, sigma):
    """N(0, sigma) noise, identical semantics to torch.normal(0, sigma, (n, m))."""
    return (sigma * jax.random.normal(key, (n, m), dtype=jnp.float32))


def _pick_tile_n(n, tile_n):
    """Row tile: multiple of 8 (or == N), capped at tile_n, >= 2 grid steps when possible."""
    tile_n = max(8, (int(tile_n) // 8) * 8)
    half = ((n // 2) // 8) * 8          # largest multiple of 8 <= N/2
    if half < 8:
        return n                        # tiny batch: single step, block == full dim
    return min(tile_n, half)


# --------------------------------------------------------------------------- wrapper
def network_forward(x, params, *, noise=None, tile_n=1024):
    """Forward pass of Network.

    x:      (N, D) inputs (float32 or bfloat16).
    params: dict from prepare_params().
    noise:  None (sigma == 0 fast path) or (N, M) float32 array ~ N(0, sigma).
    """
    N, D = x.shape
    M = params["M"]
    inv_sqrt_m = float(1.0 / np.sqrt(M))

    TN = _pick_tile_n(N, tile_n)
    num_tiles = (N + TN - 1) // TN

    out_shape = jax.ShapeDtypeStruct((num_tiles, 1, TN), jnp.float32)
    out_spec = pl.BlockSpec((1, 1, TN), lambda i: (i, 0, 0))     # lane-dense row slab

    if noise is None:
        gram = params["gram"]
        kernel = functools.partial(_gram_kernel, inv_sqrt_m=inv_sqrt_m)
        in_specs = [
            pl.BlockSpec((TN, D), lambda i: (i, 0)),             # x row tile
            pl.BlockSpec((D, D), lambda i: (0, 0)),              # Gram, resident
        ]
        operands = (x, gram)
        flops = 2 * N * D * D + 3 * N * D
        bytes_acc = (N * D * x.dtype.itemsize + D * D * 4 + N * 4)
        work = (2 * TN * D * x.dtype.itemsize + 2 * D * D * 4
                + 2 * TN * 8 + 2 * TN * D * 4)
    else:
        noise = jnp.asarray(noise, jnp.float32)
        assert noise.shape == (N, M), noise.shape
        wt = params["wt"]
        kernel = functools.partial(_noisy_kernel, inv_sqrt_m=inv_sqrt_m)
        in_specs = [
            pl.BlockSpec((TN, D), lambda i: (i, 0)),             # x row tile
            pl.BlockSpec((D, M), lambda i: (0, 0)),              # weight, resident
            pl.BlockSpec((TN, M), lambda i: (i, 0)),             # noise row tile
        ]
        operands = (x, wt, noise)
        flops = 2 * N * D * M + 3 * N * M
        bytes_acc = (N * D * x.dtype.itemsize + D * M * wt.dtype.itemsize
                     + N * M * 4 + N * 4)
        work = (2 * TN * D * x.dtype.itemsize + 2 * D * M * wt.dtype.itemsize
                + 2 * TN * M * 4 + 2 * TN * 8 + 2 * TN * M * 4)

    # Block-size-derived VMEM budget with headroom, clamped under v7x's 64 MiB.
    vmem_limit = int(min(max(32 * 2**20, 2 * work), 56 * 2**20))

    out3 = pl.pallas_call(
        kernel,
        out_shape=out_shape,
        grid=(num_tiles,),
        in_specs=in_specs,
        out_specs=out_spec,
        compiler_params=pltpu.CompilerParams(
            dimension_semantics=("parallel",),      # independent row tiles -> 2 TCs on v7x
            vmem_limit_bytes=vmem_limit,
        ),
        cost_estimate=pl.CostEstimate(
            flops=int(flops), transcendentals=0, bytes_accessed=int(bytes_acc)),
    )(*operands)

    # (num_tiles, 1, TN) lane-dense slabs -> (N, 1); padded tail rows are dropped.
    return out3.reshape(num_tiles * TN)[:N].reshape(N, 1)


# --------------------------------------------------------------------------- demo / checks
if __name__ == "__main__":
    N, D, M = 32, 32, 128
    sigma = 0.5

    key = jax.random.PRNGKey(0)
    kx, kw, kn = jax.random.split(key, 3)
    x = jax.random.normal(kx, (N, D), dtype=jnp.float32)
    w = jax.random.normal(kw, (M, D), dtype=jnp.float32)     # diagonal=False branch

    params = prepare_params(w)

    # Pure-JAX references with the exact PyTorch formulation.
    fc2 = jnp.ones((M, 1), jnp.float32) / np.sqrt(M)
    h_det = (x @ w.T) / np.sqrt(D)
    ref_det = (h_det ** 2) @ fc2

    # 1) sigma == 0 fast path (Gram-matrix rewrite); multi-step grid (TN=16 -> grid=(2,)).
    out_det = jax.block_until_ready(network_forward(x, params, noise=None))
    assert out_det.shape == (N, 1)
    np.testing.assert_allclose(np.asarray(out_det), np.asarray(ref_det), rtol=1e-4, atol=1e-4)

    # 2) General kernel with zero noise: exact check of the matmul / square / reduce path.
    zero_noise = jnp.zeros((N, M), jnp.float32)
    out_gen0 = jax.block_until_ready(network_forward(x, params, noise=zero_noise))
    np.testing.assert_allclose(np.asarray(out_gen0), np.asarray(ref_det), rtol=1e-4, atol=1e-4)

    # 3) sigma = 0.5: noise is an explicit input, so the noisy path is checked exactly.
    noise = sample_noise(kn, N, M, sigma)
    ref_noisy = ((h_det + noise) ** 2) @ fc2
    out_noisy = jax.block_until_ready(network_forward(x, params, noise=noise))
    assert out_noisy.shape == (N, 1)
    np.testing.assert_allclose(np.asarray(out_noisy), np.asarray(ref_noisy), rtol=1e-4, atol=1e-4)

    # 4) bf16 inputs (HBM-traffic option from the perf review), loose tolerance.
    params_bf16 = prepare_params(w, dtype=jnp.bfloat16)
    x_bf16 = x.astype(jnp.bfloat16)
    out_bf16 = jax.block_until_ready(network_forward(x_bf16, params_bf16, noise=zero_noise))
    np.testing.assert_allclose(np.asarray(out_bf16), np.asarray(ref_det), rtol=6e-2, atol=0.5)

    print("KERNEL_OK")
</pallas_src>

<mosaic_0001>
module attributes {stable_mosaic.version = 11 : i64} {
  func.func @_gram_kernel(%arg0: i32, %arg1: memref<16x32xf32, #tpu.memory_space<vmem>>, %arg2: memref<32x32xf32, #tpu.memory_space<vmem>>, %arg3: memref<1x1x16xf32, #tpu.memory_space<vmem>>) attributes {dimension_semantics = [#tpu.dimension_semantics<parallel>], iteration_bounds = array<i64: 2>, scalar_prefetch = 0 : i64, scratch_operands = 0 : i64, tpu.core_type = #tpu.core_type<tc>, window_params = [{transform_indices = @transform_0, window_bounds = array<i64: 16, 32>}, {pipeline_mode = #tpu.pipeline_mode<synchronous>, transform_indices = @transform_1, window_bounds = array<i64: 32, 32>}, {transform_indices = @transform_2, window_bounds = array<i64: 1, 1, 16>}]} {
    %c0 = arith.constant 0 : index
    %c0_0 = arith.constant 0 : index
    %0 = vector.load %arg1[%c0, %c0_0] : memref<16x32xf32, #tpu.memory_space<vmem>>, vector<16x32xf32>
    %c0_1 = arith.constant 0 : index
    %c0_2 = arith.constant 0 : index
    %1 = vector.load %arg2[%c0_1, %c0_2] : memref<32x32xf32, #tpu.memory_space<vmem>>, vector<32x32xf32>
    %cst = arith.constant dense<0.000000e+00> : vector<16x32xf32>
    %2 = tpu.matmul %0, %1, %cst {dimension_numbers = #tpu.dot_dimension_numbers<[1], [0], [0], [1], [0, 0, 1, 1], [], []>} : vector<16x32xf32>, vector<32x32xf32>, vector<16x32xf32> -> vector<16x32xf32>
    %3 = arith.mulf %2, %0 : vector<16x32xf32>
    %cst_3 = arith.constant dense<0.000000e+00> : vector<16xf32>
    %4 = vector.multi_reduction <add>, %3, %cst_3 [1] : vector<16x32xf32> to vector<16xf32>
    %cst_4 = arith.constant 0.0883883461 : f32
    %5 = vector.broadcast %cst_4 : f32 to vector<16xf32>
    %6 = arith.mulf %4, %5 : vector<16xf32>
    %7 = vector.shape_cast %6 : vector<16xf32> to vector<1x1x16xf32>
    %c0_5 = arith.constant 0 : index
    %c0_6 = arith.constant 0 : index
    %c0_7 = arith.constant 0 : index
    %8 = vector.load %arg3[%c0_5, %c0_6, %c0_7] : memref<1x1x16xf32, #tpu.memory_space<vmem>>, vector<1x1x16xf32>
    tpu.vector_store %arg3[%c0_5, %c0_6, %c0_7], %7 {strides = array<i32>} : memref<1x1x16xf32, #tpu.memory_space<vmem>>, vector<1x1x16xf32>,
    return
  }
  func.func @transform_0(%arg0: i32) -> (i32, i32) {
    %c0_i32 = arith.constant 0 : i32
    %c0_i32_0 = arith.constant 0 : i32
    return %arg0, %c0_i32 : i32, i32
  }
  func.func @transform_1(%arg0: i32) -> (i32, i32) {
    %c0_i32 = arith.constant 0 : i32
    %c0_i32_0 = arith.constant 0 : i32
    %c0_i32_1 = arith.constant 0 : i32
    return %c0_i32, %c0_i32_0 : i32, i32
  }
  func.func @transform_2(%arg0: i32) -> (i32, i32, i32) {
    %c0_i32 = arith.constant 0 : i32
    %c0_i32_0 = arith.constant 0 : i32
    %c0_i32_1 = arith.constant 0 : i32
    return %arg0, %c0_i32, %c0_i32_0 : i32, i32, i32
  }
}

</mosaic_0001>

<llo_original>
// kernel: tpu_custom_call.1
$region0: #{tpu_custom_call.1}
  #allocation0 [shape = 'u32[]', space=smem, size = 0x4, offset = 0x4, fixed_abs, tag = 'smem constant byte address 0x4 - core index']
  #allocation1 [shape = 'u32[72,128]{1,0:T(1,128)}', space=vmem, size = 0x9000, scoped, tag = 'internal scratch']
  %s0 = inlined_call_operand.hbm [shape: f32[32,32], index: 0, kind: input, shape index: {}]
  %s1 = inlined_call_operand.hbm [shape: f32[32,32], index: 1, kind: input, shape index: {}]
  %s2 = inlined_call_operand.hbm [shape: f32[2,1,16], index: 2, kind: output, shape index: {}]
  %s3 = sld [smem:[#allocation0]]
  $region49: #{tpu_custom_call.1} parent=0
    _
  %s5 = ssub.s32 1, %s3
  %s6 = scalar_select 0, %s5, %s3
  $region1: #{tpu_custom_call.1} parent=0
    #allocation2 [shape = 'u8[16384]{0}', space=vmem, size = 0x4000, scoped, tag = 'input window, operand 0']
    #allocation3 [shape = 's32[2]{0}', space=sflag, size = 0x8, scoped, tag = 'scoped memory for tpu_custom_call.1']
    #allocation4 [shape = 's32[2]{0}', space=sflag, size = 0x8, scoped, tag = 'scoped memory for tpu_custom_call.1']
    #allocation5 [shape = 'u8[16384]{0}', space=vmem, size = 0x4000, scoped, tag = 'input window, operand 1, single buffered']
    #allocation6 [shape = 's32[1]{0}', space=sflag, size = 0x4, scoped, tag = 'scoped memory for tpu_custom_call.1']
    #allocation7 [shape = 'u8[1024]{0}', space=vmem, size = 0x400, scoped, tag = 'output window, operand 0']
    %7 = vsyncpa [#allocation3], 0
    %s8 = scalar_lea.sflag [#allocation3], 1
    %9 = vsyncpa %s8, 0
    %10 = vsyncpa [#allocation6], 0
    %11 = vsyncpa [#allocation4], 0
    %s12 = scalar_lea.sflag [#allocation4], 1
    %13 = vsyncpa %s12, 0
    loop: start=0, step=1, limit=4
    $region2: #{tpu_custom_call.1} parent=1 // loop_pre_header
      _
    $region3: #{tpu_custom_call.1} parent=1 // loop_header
      %s15 = sphi 0, %s19
      %p16 = scmp.ge.s32.totalorder %s15, 4
      %s25 = sphi 0, %s27
      %s28 = sphi 0, %s25
      %s29 = sphi 0, %s28
      %s45 = sphi 0, %s29
      %s49 = sphi 0, %s49
      %s51 = sphi 0, %s49
      %s52 = sphi 0, %s51
      %s66 = sphi 0, %s52
      %s72 = sphi 0, %s74
      %s75 = sphi 0, %s72
      %s76 = sphi 0, %s75
      %s92 = sphi 0, %s76
    $region4: #{tpu_custom_call.1} parent=1 // loop_header_branch
      %18 = sbr.rel (%p16) target = $region8
    $region5: #{tpu_custom_call.1} parent=1 // loop_body
      %s20 = ssub.s32 %s15, 1
      %s21 = ssub.s32 %s15, 2
      %s22 = sadd.s32 %s15, 1
      %s23 = ssub.s32 %s15, %s22
      %p24 = scmp.eq.s32.totalorder %s23, 0
      %s26 = sadd.s32 %s25, 1
      %s27 = scalar_select %p24, %s25, %s26
      %p30 = pneg %p24
      %p31 = scmp.eq.s32.totalorder %s15, 1
      %p32 = por %p30, %p31
      %p33 = scmp.ne.s32.totalorder %s25, %s28
      %p34 = scmp.eq.s32.totalorder %s15, 0
      %p35 = por %p33, %p34
      %p36 = scmp.ne.s32.totalorder %s25, %s28
      %p37 = scmp.eq.s32.totalorder %s20, 1
      %p38 = por %p36, %p37
      %p39 = scmp.ne.s32.totalorder %s28, %s29
      %p40 = scmp.eq.s32.totalorder %s20, 0
      %p41 = por %p39, %p40
      %p42 = scmp.ne.s32.totalorder %s28, %s29
      %p43 = scmp.eq.s32.totalorder %s21, 1
      %p44 = por %p42, %p43
      %p46 = scmp.ne.s32.totalorder %s29, %s45
      %p47 = scmp.eq.s32.totalorder %s21, 0
      %p48 = por %p46, %p47
      %s50 = sadd.s32 %s49, 1
      %p53 = scmp.eq.s32.totalorder %s15, 1
      %p54 = scmp.ne.s32.totalorder %s49, %s51
      %p55 = scmp.eq.s32.totalorder %s15, 0
      %p56 = por %p54, %p55
      %p57 = scmp.ne.s32.totalorder %s49, %s51
      %p58 = scmp.eq.s32.totalorder %s20, 1
      %p59 = por %p57, %p58
      %p60 = scmp.ne.s32.totalorder %s51, %s52
      %p61 = scmp.eq.s32.totalorder %s20, 0
      %p62 = por %p60, %p61
      %p63 = scmp.ne.s32.totalorder %s51, %s52
      %p64 = scmp.eq.s32.totalorder %s21, 1
      %p65 = por %p63, %p64
      %p67 = scmp.ne.s32.totalorder %s52, %s66
      %p68 = scmp.eq.s32.totalorder %s21, 0
      %p69 = por %p67, %p68
      %s70 = ssub.s32 %s15, %s22
      %p71 = scmp.eq.s32.totalorder %s70, 0
      %s73 = sadd.s32 %s72, 1
      %s74 = scalar_select %p71, %s72, %s73
      %p77 = pneg %p71
      %p78 = scmp.eq.s32.totalorder %s15, 1
      %p79 = por %p77, %p78
      %p80 = scmp.ne.s32.totalorder %s72, %s75
      %p81 = scmp.eq.s32.totalorder %s15, 0
      %p82 = por %p80, %p81
      %p83 = scmp.ne.s32.totalorder %s72, %s75
      %p84 = scmp.eq.s32.totalorder %s20, 1
      %p85 = por %p83, %p84
      %p86 = scmp.ne.s32.totalorder %s75, %s76
      %p87 = scmp.eq.s32.totalorder %s20, 0
      %p88 = por %p86, %p87
      %p89 = scmp.ne.s32.totalorder %s75, %s76
      %p90 = scmp.eq.s32.totalorder %s21, 1
      %p91 = por %p89, %p90
      %p93 = scmp.ne.s32.totalorder %s76, %s92
      %p94 = scmp.eq.s32.totalorder %s21, 0
      %p95 = por %p93, %p94
      %p96 = scmp.le.s32.totalorder 1, %s15
      %p97 = scmp.lt.s32.totalorder %s15, 3
      %p98 = pnand %p96, %p97
      %p99 = pneg %p98
      // Predicated region
      $region9: #{tpu_custom_call.1} parent=5 // pred_check
        _
      $region10: #{tpu_custom_call.1} parent=5 // pred_check_branch
        %101 = sbr.rel (%p98) target = $region12
      $region11: #{tpu_custom_call.1} parent=5 // pred_region
        %s102 = ssub.s32 %s15, 1
        // Predicated region
        $region13: #{tpu_custom_call.1} parent=11 // pred_check
          %p103 = pneg %p62
        $region14: #{tpu_custom_call.1} parent=11 // pred_check_branch
          %105 = sbr.rel (%p103) target = $region16
        $region15: #{tpu_custom_call.1} parent=11 // pred_region
          %107 = vsyncadd [#allocation6], 0
          %s108 = sshll.u32 %s1, 4
          %s109 = int_to_ptr.hbm [resolvable:$true] %s108
          %s110 = sshll.u32 [#allocation5], 4
          %s111 = int_to_ptr.vmem [resolvable:$true] %s110
          %116 = dma.hbm_to_vmem [thread:$0]  %s109, 512, %s111, [#allocation6], 128, 128, 8
        $region16: #{tpu_custom_call.1} parent=11 // pred_fallthru
          _
      $region12: #{tpu_custom_call.1} parent=5 // pred_fallthru
        _
      %p117 = scmp.lt.s32.totalorder %s15, 2
      // Predicated region
      $region17: #{tpu_custom_call.1} parent=5 // pred_check
        %p118 = pneg %p117
      $region18: #{tpu_custom_call.1} parent=5 // pred_check_branch
        %120 = sbr.rel (%p118) target = $region20
      $region19: #{tpu_custom_call.1} parent=5 // pred_region
        // Predicated region
        $region21: #{tpu_custom_call.1} parent=19 // pred_check
          %p121 = pneg %p35
        $region22: #{tpu_custom_call.1} parent=19 // pred_check_branch
          %123 = sbr.rel (%p121) target = $region24
        $region23: #{tpu_custom_call.1} parent=19 // pred_region
          %s124 = sand.u32 %s25, 1
          %s125 = scalar_lea.sflag [#allocation3], %s124
          %s126 = sand.u32 %s25, 1
          %s127 = smul.addr %s126, 16
          %s128 = scalar_lea.vmem [#allocation2], %s127
          %s129 = smul.u32 2, %s15
          %131 = vsyncadd %s125, 0
          %s132 = smul.addr %s129, 8
          %s133 = scalar_lea.hbm %s0, %s132
          %s134 = sshll.u32 %s133, 4
          %s135 = int_to_ptr.hbm [resolvable:$true] %s134
          %s136 = sshll.u32 %s128, 4
          %s137 = int_to_ptr.vmem [resolvable:$true] %s136
          %142 = dma.hbm_to_vmem [thread:$0]  %s135, 256, %s137, %s125, 128, 128, 8
        $region24: #{tpu_custom_call.1} parent=19 // pred_fallthru
          _
      $region20: #{tpu_custom_call.1} parent=5 // pred_fallthru
        _
      %p143 = scmp.le.s32.totalorder 1, %s15
      %p144 = scmp.lt.s32.totalorder %s15, 3
      %p145 = pnand %p143, %p144
      %p146 = pneg %p145
      // Predicated region
      $region25: #{tpu_custom_call.1} parent=5 // pred_check
        _
      $region26: #{tpu_custom_call.1} parent=5 // pred_check_branch
        %148 = sbr.rel (%p145) target = $region28
      $region27: #{tpu_custom_call.1} parent=5 // pred_region
        %s149 = ssub.s32 %s15, 1
        %s150 = sand.u32 %s28, 1
        %s151 = scalar_lea.sflag [#allocation3], %s150
        %s152 = sand.u32 %s28, 1
        %s153 = smul.addr %s152, 16
        %s154 = scalar_lea.vmem [#allocation2], %s153
        // Predicated region
        $region29: #{tpu_custom_call.1} parent=27 // pred_check
          %p155 = pneg %p41
        $region30: #{tpu_custom_call.1} parent=27 // pred_check_branch
          %157 = sbr.rel (%p155) target = $region32
        $region31: #{tpu_custom_call.1} parent=27 // pred_region
          %159 = dma.done %s151, 256
        $region32: #{tpu_custom_call.1} parent=27 // pred_fallthru
          _
        // Predicated region
        $region33: #{tpu_custom_call.1} parent=27 // pred_check
          %p160 = pneg %p62
        $region34: #{tpu_custom_call.1} parent=27 // pred_check_branch
          %162 = sbr.rel (%p160) target = $region36
        $region35: #{tpu_custom_call.1} parent=27 // pred_region
          %164 = dma.done [#allocation6], 512
        $region36: #{tpu_custom_call.1} parent=27 // pred_fallthru
          _
        %s165 = sand.u32 %s28, 1
        %s166 = scalar_lea.sflag [#allocation3], %s165
        %s167 = sand.u32 %s28, 1
        %s168 = smul.addr %s167, 16
        %s169 = scalar_lea.vmem [#allocation2], %s168
        %p170 = pneg %p41
        %p171 = pneg %p38
        %p172 = pneg %p62
        %p173 = pneg %p59
        %p174 = pneg %p88
        %p175 = pneg %p85
        %s176 = sand.u32 %s75, 1
        %s177 = scalar_lea.sflag [#allocation4], %s176
        %s178 = sand.u32 %s75, 1
        %s179 = scalar_lea.vmem [#allocation7], %s178
        %s180 = smul.u32 2, %s20
        %v181 = vld [vmem:[%s154] sm:$0xff]
        %v182 = vld [vmem:[%s154 + $0x8] sm:$0xff]
        %v183 = vld [vmem:[#allocation5] sm:$0xff]
        %v184 = vld [vmem:[#allocation5 + $0x8] sm:$0xff]
        %v185 = vld [vmem:[#allocation5 + $0x10] sm:$0xff]
        %v186 = vld [vmem:[#allocation5 + $0x18] sm:$0xff]
        %vm187 = vcmask 261120
        %v189 = vsel %vm187, %v181, 0
        %v192 = vsel %vm187, %v182, 0
        %194 = vmatpush.msra.mxu0 0.0
        %195 = vmatpush.msra.mxu0 0.0
        %196 = vmatpush.msra.mxu0 0.0
        %197 = vmatpush.msra.mxu0 0.0
        %198 = vmatpush.msra.mxu0 0.0
        %199 = vmatpush.msra.mxu0 0.0
        %200 = vmatpush.msra.mxu0 0.0
        %201 = vmatpush.msra.mxu0 0.0
        %202 = vmatpush.msra.mxu0 0.0
        %203 = vmatpush.msra.mxu0 0.0
        %204 = vmatpush.msra.mxu0 0.0
        %205 = vmatpush.msra.mxu0 0.0
        %206 = vmatpush.msra.mxu0 %v186
        %207 = vmatpush.msra.mxu0 %v185
        %208 = vmatpush.msra.mxu0 %v184
        %209 = vmatpush.msra.mxu0 %v183
        %210 = vmatmul.f32.gmra.mxu0 %v189
        %v211 = vpop.f32.mrf.mxu0
        %v212 = vadd.f32 0.0, %v211
        %213 = vmatmul.f32.gmra.mxu0 %v192
        %v214 = vpop.f32.mrf.mxu0
        %v215 = vadd.f32 0.0, %v214
        %216 = vdwg.mxu0
        %v217 = vmul.f32 %v212, %v181
        %v218 = vmul.f32 %v215, %v182
        %v219 = vsel %vm187, %v217, 0.0
        %220 = vadd.xlane.f32.xlu0 %v219
        %v221 = vpop.xlane.xlu0 %220
        %v222 = vsel %vm187, %v218, 0.0
        %223 = vadd.xlane.f32.xlu0 %v222
        %v224 = vpop.xlane.xlu0 %223
        %v225 = vmul.f32 %v221, 0.088388346
        %v226 = vmul.f32 %v224, 0.088388346
        %v229 = vlaneseq
        %v230 = vand.u32 %v229, 127
        %v231 = vperm.slane %v225, %v230
        %v232 = vadd.s32 %v230, 4294967288
        %v233 = vperm.slane %v226, %v232
        %vm234 = vcmask 130112
        %v235 = vsel %vm234, %v233, %v231
        %vm237 = vcmask 122880
        %238 = vst.msk [vmem:[%s179] sm:$0x1] %vm237, %v235
        %s239 = sand.u32 %s75, 1
        %s240 = scalar_lea.sflag [#allocation4], %s239
        %s241 = sand.u32 %s75, 1
        %s242 = scalar_lea.vmem [#allocation7], %s241
        // Predicated region
        $region37: #{tpu_custom_call.1} parent=27 // pred_check
          %p243 = pneg %p85
        $region38: #{tpu_custom_call.1} parent=27 // pred_check_branch
          %245 = sbr.rel (%p243) target = $region40
        $region39: #{tpu_custom_call.1} parent=27 // pred_region
          %247 = vsyncadd %s240, 0
          %s248 = scalar_lea.hbm %s2, %s20
          %s250 = sshll.u32 %s242, 4
          %s251 = int_to_ptr.vmem [resolvable:$true] %s250
          %s252 = sshll.u32 %s248, 4
          %s253 = int_to_ptr.hbm [resolvable:$true] %s252
          %255 = dma.vmem_to_hbm [thread:$0]  %s251, 16, %s253, %s240
        $region40: #{tpu_custom_call.1} parent=27 // pred_fallthru
          _
      $region28: #{tpu_custom_call.1} parent=5 // pred_fallthru
        _
      %p256 = scmp.le.s32.totalorder 2, %s15
      // Predicated region
      $region41: #{tpu_custom_call.1} parent=5 // pred_check
        %p257 = pneg %p256
      $region42: #{tpu_custom_call.1} parent=5 // pred_check_branch
        %259 = sbr.rel (%p257) target = $region44
      $region43: #{tpu_custom_call.1} parent=5 // pred_region
        %s260 = ssub.s32 %s15, 2
        // Predicated region
        $region45: #{tpu_custom_call.1} parent=43 // pred_check
          %p261 = pneg %p91
        $region46: #{tpu_custom_call.1} parent=43 // pred_check_branch
          %263 = sbr.rel (%p261) target = $region48
        $region47: #{tpu_custom_call.1} parent=43 // pred_region
          %s264 = sand.u32 %s76, 1
          %s265 = scalar_lea.sflag [#allocation4], %s264
          %s266 = sand.u32 %s76, 1
          %s267 = scalar_lea.vmem [#allocation7], %s266
          %269 = dma.done %s265, 16
        $region48: #{tpu_custom_call.1} parent=43 // pred_fallthru
          _
      $region44: #{tpu_custom_call.1} parent=5 // pred_fallthru
        _
    $region6: #{tpu_custom_call.1} parent=1 // loop_footer
      %s19 = sadd.s32 1, %s15
    $region7: #{tpu_custom_call.1} parent=1 // loop_footer_branch
      %14 = sbr.rel target = $region3
    $region8: #{tpu_custom_call.1} parent=1 // loop_exit
      _
    %270 = vsyncpa [#allocation3], 1
    %s271 = scalar_lea.sflag [#allocation3], 1
    %272 = vsyncpa %s271, 1
    %273 = vsyncpa [#allocation6], 1
    %274 = vsyncpa [#allocation4], 1
    %s275 = scalar_lea.sflag [#allocation4], 1
    %276 = vsyncpa %s275, 1

</llo_original>
